<compile_context>
chip_gen: v6e
topology: v6e:2x2x1
jax: 0.10.0
libtpu: 0.0.40
codegen_flags: <defaults>
</compile_context>

<pallas_src>
import functools
import math

import jax
import jax.numpy as jnp
import numpy as np
from jax.experimental import pallas as pl


def _attn_subblock_kernel(x_ref, wqkv_ref, bqkv_ref, wo_ref, hm_ref, vecs_ref, o_ref,
                          *, batch: int, seq_len: int, num_heads: int, eps: float):
    B, L, H = batch, seq_len, num_heads
    N, D = x_ref.shape                    # N = B * L

    x = x_ref[...]                        # (N, D) f32
    vecs = vecs_ref[...]                  # (3, D) f32 = [gamma, beta, bo]
    gamma, beta, bo = vecs[0:1, :], vecs[1:2, :], vecs[2:3, :]

    # ---- pre-LayerNorm (f32 elementwise; v5e has no bf16 VPU/EUP) -------------
    mean = jnp.mean(x, axis=-1, keepdims=True)
    var = jnp.mean((x - mean) ** 2, axis=-1, keepdims=True)
    xn = (x - mean) * jax.lax.rsqrt(var + eps)
    xn = xn * gamma + beta

    # ---- fused QKV projection: one (N,D)x(D,3D) bf16 matmul, f32 accumulate ---
    # 1/sqrt(head_dim) is already folded into the Q columns / bias on the host.
    qkv = jnp.dot(xn.astype(jnp.bfloat16), wqkv_ref[...],
                  preferred_element_type=jnp.float32) + bqkv_ref[...]   # (N, 3D) f32

    q = qkv[:, :D]
    k = qkv[:, D:2 * D]
    v = qkv[:, 2 * D:]

    # leading split is tile-aligned (L == 8 == f32 sublane tile) -> layout-preserving
    q3 = q.reshape(B, L, D)
    k3 = k.reshape(B, L, D).astype(jnp.bfloat16)
    v3 = v.reshape(B, L, D).astype(jnp.bfloat16)

    # ---- stack all heads on the sublane (row) axis with the host-built mask ---
    # hm[h, d] = 1 iff column d belongs to head h.  Row block h of q_stk keeps only
    # head-h columns, so one batched matmul against the full K produces every head's
    # (L, L) score block stacked on sublanes.
    hm = hm_ref[...]                                                    # (H, D) f32
    q_stk = (q3[:, None, :, :] * hm[None, :, None, :]).reshape(B, H * L, D)
    q_stk = q_stk.astype(jnp.bfloat16)                                  # (B, H*L, D)

    s = jnp.einsum('bqd,bkd->bqk', q_stk, k3,
                   preferred_element_type=jnp.float32)                  # (B, H*L, L)

    # ---- softmax (f32; exp + approximate reciprocal run on the EUP slot) ------
    s = s - jnp.max(s, axis=-1, keepdims=True)
    p = jnp.exp(s)
    p = p * pl.reciprocal(jnp.sum(p, axis=-1, keepdims=True), approx=True)

    o_full = jnp.einsum('bqk,bkd->bqd', p.astype(jnp.bfloat16), v3,
                        preferred_element_type=jnp.float32)             # (B, H*L, D)

    # ---- fused un-mask + head-fold + output projection -------------------------
    # Lay the H per-head output blocks side by side on the lane axis (H*D = 128,
    # lane-dense) and contract against the block-masked Wo^T built on the host:
    # the zero rows of wo_ref kill the cross-head garbage columns, so no VPU mask
    # multiply and no H-1 fold adds are needed -- it is all one MXU matmul.
    o4 = o_full.reshape(B, H, L, D)                                     # layout-preserving
    o_cat = jnp.concatenate([o4[:, h, :, :] for h in range(H)], axis=-1)  # (B, L, H*D)
    o_flat = o_cat.reshape(N, H * D).astype(jnp.bfloat16)               # (N, 128)

    out = jnp.dot(o_flat, wo_ref[...], preferred_element_type=jnp.float32) + bo
    o_ref[...] = out.astype(o_ref.dtype)


def attention_subblock(x, params, *, num_heads: int, eps: float = 1e-6):
    """x: (B, L, D) float32. params: PyTorch-shaped weights (see make_params)."""
    B, L, D = x.shape
    hd = D // num_heads
    scale = 1.0 / math.sqrt(hd)

    # One-time host-side prep (free):
    #  * fold 1/sqrt(head_dim) into the Q weights/bias,
    #  * fuse Q/K/V and pre-transpose so the kernel never transposes a weight tile,
    #  * precompute the (H, D) head mask,
    #  * build the block-masked output weight wo_flat[(h*D+d), e] = mask_h[d] * Wo[e, d],
    #  * cast MXU operands to bf16, merge the small per-channel vectors.
    wq = params["wq"] * scale                                            # (D, D)
    bq = params["bq"] * scale                                            # (1, D)
    wqkv_t = jnp.concatenate([wq, params["wk"], params["wv"]],
                             axis=0).T.astype(jnp.bfloat16)              # (D, 3D)
    bqkv = jnp.concatenate([bq, params["bk"], params["bv"]], axis=1)     # (1, 3D) f32

    head_mask = (jnp.arange(D)[None, :] // hd
                 == jnp.arange(num_heads)[:, None]).astype(jnp.float32)  # (H, D)
    wo_stk = head_mask[:, :, None] * params["wo"].T[None, :, :]          # (H, D, D)
    wo_flat = wo_stk.reshape(num_heads * D, D).astype(jnp.bfloat16)      # (H*D, D)

    vecs = jnp.concatenate([params["gamma"], params["beta"], params["bo"]],
                           axis=0)                                       # (3, D)

    kernel = functools.partial(_attn_subblock_kernel, batch=B, seq_len=L,
                               num_heads=num_heads, eps=eps)

    # Whole problem fits trivially in VMEM at these sizes -> single invocation
    # (no grid), whole arrays as single VMEM blocks.  (For production sizes: add a
    # "parallel" batch/query-tile grid axis for v7x's 2 TensorCores and a flash-style
    # online-softmax so scores are never materialized -- see header comment.)
    out2d = pl.pallas_call(
        kernel,
        out_shape=jax.ShapeDtypeStruct((B * L, D), x.dtype),
    )(x.reshape(B * L, D), wqkv_t, bqkv, wo_flat, head_mask, vecs)
    return out2d.reshape(B, L, D)


def reference_forward(x, params, *, num_heads: int, eps: float = 1e-6):
    """Pure-JAX f32 reference of LayerNorm + MultiheadAttention self-attention."""
    B, L, D = x.shape
    hd = D // num_heads
    mean = x.mean(-1, keepdims=True)
    var = ((x - mean) ** 2).mean(-1, keepdims=True)
    xn = (x - mean) / jnp.sqrt(var + eps) * params["gamma"] + params["beta"]
    q = xn @ params["wq"].T + params["bq"]
    k = xn @ params["wk"].T + params["bk"]
    v = xn @ params["wv"].T + params["bv"]
    q = q.reshape(B, L, num_heads, hd).transpose(0, 2, 1, 3) / math.sqrt(hd)
    k = k.reshape(B, L, num_heads, hd).transpose(0, 2, 1, 3)
    v = v.reshape(B, L, num_heads, hd).transpose(0, 2, 1, 3)
    s = jnp.einsum("bhqd,bhkd->bhqk", q, k)
    p = jax.nn.softmax(s, axis=-1)
    o = jnp.einsum("bhqk,bhkd->bhqd", p, v)
    o = o.transpose(0, 2, 1, 3).reshape(B, L, D)
    return o @ params["wo"].T + params["bo"]


def make_params(key, dim):
    """Deterministic synthetic parameters with PyTorch MHA shapes."""
    ks = jax.random.split(key, 6)
    scale = 1.0 / math.sqrt(dim)
    in_proj_w = jax.random.uniform(ks[0], (3 * dim, dim), jnp.float32, -scale, scale)
    in_proj_b = jax.random.uniform(ks[1], (3 * dim,), jnp.float32, -scale, scale)
    wo = jax.random.uniform(ks[2], (dim, dim), jnp.float32, -scale, scale)
    bo = jax.random.uniform(ks[3], (dim,), jnp.float32, -scale, scale)
    gamma = jnp.ones((dim,), jnp.float32)
    beta = jnp.zeros((dim,), jnp.float32)
    return {
        "wq": in_proj_w[:dim], "wk": in_proj_w[dim:2 * dim], "wv": in_proj_w[2 * dim:],
        "bq": in_proj_b[:dim].reshape(1, dim),
        "bk": in_proj_b[dim:2 * dim].reshape(1, dim),
        "bv": in_proj_b[2 * dim:].reshape(1, dim),
        "wo": wo, "bo": bo.reshape(1, dim),
        "gamma": gamma.reshape(1, dim), "beta": beta.reshape(1, dim),
    }


if __name__ == "__main__":
    B, L, D, H = 2, 8, 32, 4   # batch, seq, embed_dim, num_heads (head_dim = 8)
    key = jax.random.PRNGKey(0)
    kx, kp = jax.random.split(key)
    x = jax.random.normal(kx, (B, L, D), jnp.float32)
    params = make_params(kp, D)

    out = jax.block_until_ready(attention_subblock(x, params, num_heads=H))
    ref = jax.block_until_ready(reference_forward(x, params, num_heads=H))

    # Tolerance is bf16-matmul + approx-reciprocal aware (reference is pure f32).
    np.testing.assert_allclose(np.asarray(out), np.asarray(ref), atol=3e-2, rtol=3e-2)

    print("KERNEL_OK")
</pallas_src>

<mosaic_0001>
module attributes {stable_mosaic.version = 11 : i64} {
  func.func @_attn_subblock_kernel(%arg0: memref<16x32xf32, #tpu.memory_space<vmem>>, %arg1: memref<32x96xbf16, #tpu.memory_space<vmem>>, %arg2: memref<1x96xf32, #tpu.memory_space<vmem>>, %arg3: memref<128x32xbf16, #tpu.memory_space<vmem>>, %arg4: memref<4x32xf32, #tpu.memory_space<vmem>>, %arg5: memref<3x32xf32, #tpu.memory_space<vmem>>, %arg6: memref<16x32xf32, #tpu.memory_space<vmem>>) attributes {dimension_semantics = [], scalar_prefetch = 0 : i64, scratch_operands = 0 : i64, tpu.core_type = #tpu.core_type<tc>} {
    %c0 = arith.constant 0 : index
    %c0_0 = arith.constant 0 : index
    %0 = vector.load %arg0[%c0, %c0_0] : memref<16x32xf32, #tpu.memory_space<vmem>>, vector<16x32xf32>
    %c0_1 = arith.constant 0 : index
    %c0_2 = arith.constant 0 : index
    %1 = vector.load %arg5[%c0_1, %c0_2] : memref<3x32xf32, #tpu.memory_space<vmem>>, vector<3x32xf32>
    %2 = vector.extract_strided_slice %1 {offsets = [0, 0], sizes = [1, 32], strides = [1, 1]} : vector<3x32xf32> to vector<1x32xf32>
    %3 = vector.extract_strided_slice %1 {offsets = [1, 0], sizes = [1, 32], strides = [1, 1]} : vector<3x32xf32> to vector<1x32xf32>
    %4 = vector.extract_strided_slice %1 {offsets = [2, 0], sizes = [1, 32], strides = [1, 1]} : vector<3x32xf32> to vector<1x32xf32>
    %cst = arith.constant dense<0.000000e+00> : vector<16xf32>
    %5 = vector.multi_reduction <add>, %0, %cst [1] : vector<16x32xf32> to vector<16xf32>
    %6 = vector.shape_cast %5 : vector<16xf32> to vector<16x1xf32>
    %cst_3 = arith.constant 3.200000e+01 : f32
    %7 = vector.broadcast %cst_3 : f32 to vector<16x1xf32>
    %8 = arith.divf %6, %7 : vector<16x1xf32>
    %9 = vector.broadcast %8 : vector<16x1xf32> to vector<16x32xf32>
    %10 = arith.subf %0, %9 : vector<16x32xf32>
    %11 = arith.mulf %10, %10 : vector<16x32xf32>
    %cst_4 = arith.constant dense<0.000000e+00> : vector<16xf32>
    %12 = vector.multi_reduction <add>, %11, %cst_4 [1] : vector<16x32xf32> to vector<16xf32>
    %13 = vector.shape_cast %12 : vector<16xf32> to vector<16x1xf32>
    %cst_5 = arith.constant 3.200000e+01 : f32
    %14 = vector.broadcast %cst_5 : f32 to vector<16x1xf32>
    %15 = arith.divf %13, %14 : vector<16x1xf32>
    %16 = vector.broadcast %8 : vector<16x1xf32> to vector<16x32xf32>
    %17 = arith.subf %0, %16 : vector<16x32xf32>
    %cst_6 = arith.constant 9.99999997E-7 : f32
    %18 = vector.broadcast %cst_6 : f32 to vector<16x1xf32>
    %19 = arith.addf %15, %18 : vector<16x1xf32>
    %20 = math.rsqrt %19 : vector<16x1xf32>
    %21 = vector.broadcast %20 : vector<16x1xf32> to vector<16x32xf32>
    %22 = arith.mulf %17, %21 : vector<16x32xf32>
    %23 = vector.broadcast %2 : vector<1x32xf32> to vector<16x32xf32>
    %24 = arith.mulf %22, %23 : vector<16x32xf32>
    %25 = vector.broadcast %3 : vector<1x32xf32> to vector<16x32xf32>
    %26 = arith.addf %24, %25 : vector<16x32xf32>
    %27 = arith.truncf %26 : vector<16x32xf32> to vector<16x32xbf16>
    %c0_7 = arith.constant 0 : index
    %c0_8 = arith.constant 0 : index
    %28 = vector.load %arg1[%c0_7, %c0_8] : memref<32x96xbf16, #tpu.memory_space<vmem>>, vector<32x96xbf16>
    %cst_9 = arith.constant dense<0.000000e+00> : vector<16x96xf32>
    %29 = tpu.matmul %27, %28, %cst_9 {dimension_numbers = #tpu.dot_dimension_numbers<[1], [0], [0], [1], [0, 0, 1, 1], [], []>} : vector<16x32xbf16>, vector<32x96xbf16>, vector<16x96xf32> -> vector<16x96xf32>
    %c0_10 = arith.constant 0 : index
    %c0_11 = arith.constant 0 : index
    %30 = vector.load %arg2[%c0_10, %c0_11] : memref<1x96xf32, #tpu.memory_space<vmem>>, vector<1x96xf32>
    %31 = vector.broadcast %30 : vector<1x96xf32> to vector<16x96xf32>
    %32 = arith.addf %29, %31 : vector<16x96xf32>
    %33 = vector.extract_strided_slice %32 {offsets = [0, 0], sizes = [16, 32], strides = [1, 1]} : vector<16x96xf32> to vector<16x32xf32>
    %34 = vector.extract_strided_slice %32 {offsets = [0, 32], sizes = [16, 32], strides = [1, 1]} : vector<16x96xf32> to vector<16x32xf32>
    %35 = vector.extract_strided_slice %32 {offsets = [0, 64], sizes = [16, 32], strides = [1, 1]} : vector<16x96xf32> to vector<16x32xf32>
    %36 = vector.shape_cast %33 : vector<16x32xf32> to vector<2x8x32xf32>
    %37 = vector.shape_cast %34 : vector<16x32xf32> to vector<2x8x32xf32>
    %38 = arith.truncf %37 : vector<2x8x32xf32> to vector<2x8x32xbf16>
    %39 = vector.shape_cast %35 : vector<16x32xf32> to vector<2x8x32xf32>
    %40 = arith.truncf %39 : vector<2x8x32xf32> to vector<2x8x32xbf16>
    %c0_12 = arith.constant 0 : index
    %c0_13 = arith.constant 0 : index
    %41 = vector.load %arg4[%c0_12, %c0_13] : memref<4x32xf32, #tpu.memory_space<vmem>>, vector<4x32xf32>
    %42 = vector.shape_cast %36 : vector<2x8x32xf32> to vector<2x1x8x32xf32>
    %43 = vector.shape_cast %41 : vector<4x32xf32> to vector<1x4x1x32xf32>
    %44 = vector.broadcast %42 : vector<2x1x8x32xf32> to vector<2x4x8x32xf32>
    %45 = vector.broadcast %43 : vector<1x4x1x32xf32> to vector<2x4x8x32xf32>
    %46 = arith.mulf %44, %45 : vector<2x4x8x32xf32>
    %47 = vector.shape_cast %46 : vector<2x4x8x32xf32> to vector<2x32x32xf32>
    %48 = arith.truncf %47 : vector<2x32x32xf32> to vector<2x32x32xbf16>
    "tpu.trace_start"() <{level = 10 : i32, message = "bqd,bkd->bqk"}> : () -> ()
    %cst_14 = arith.constant dense<0.000000e+00> : vector<2x32x8xf32>
    %49 = tpu.matmul %48, %38, %cst_14 {dimension_numbers = #tpu.dot_dimension_numbers<[2], [2], [1], [1], [0, 0, 0, 1, 1, 1], [0], [0]>} : vector<2x32x32xbf16>, vector<2x8x32xbf16>, vector<2x32x8xf32> -> vector<2x32x8xf32>
    "tpu.trace_stop"() : () -> ()
    %cst_15 = arith.constant dense<0xFF800000> : vector<2x32xf32>
    %50 = vector.multi_reduction <maximumf>, %49, %cst_15 [2] : vector<2x32x8xf32> to vector<2x32xf32>
    %51 = vector.shape_cast %50 : vector<2x32xf32> to vector<2x32x1xf32>
    %52 = vector.broadcast %51 : vector<2x32x1xf32> to vector<2x32x8xf32>
    %53 = arith.subf %49, %52 : vector<2x32x8xf32>
    %54 = math.exp %53 : vector<2x32x8xf32>
    %cst_16 = arith.constant dense<0.000000e+00> : vector<2x32xf32>
    %55 = vector.multi_reduction <add>, %54, %cst_16 [2] : vector<2x32x8xf32> to vector<2x32xf32>
    %56 = vector.shape_cast %55 : vector<2x32xf32> to vector<2x32x1xf32>
    %57 = tpu.reciprocal %56 {approx = true} : vector<2x32x1xf32> -> vector<2x32x1xf32>
    %58 = vector.broadcast %57 : vector<2x32x1xf32> to vector<2x32x8xf32>
    %59 = arith.mulf %54, %58 : vector<2x32x8xf32>
    %60 = arith.truncf %59 : vector<2x32x8xf32> to vector<2x32x8xbf16>
    "tpu.trace_start"() <{level = 10 : i32, message = "bqk,bkd->bqd"}> : () -> ()
    %cst_17 = arith.constant dense<0.000000e+00> : vector<2x32x32xf32>
    %61 = tpu.matmul %60, %40, %cst_17 {dimension_numbers = #tpu.dot_dimension_numbers<[2], [1], [1], [2], [0, 0, 0, 1, 1, 2], [0], [0]>} : vector<2x32x8xbf16>, vector<2x8x32xbf16>, vector<2x32x32xf32> -> vector<2x32x32xf32>
    "tpu.trace_stop"() : () -> ()
    %62 = vector.shape_cast %61 : vector<2x32x32xf32> to vector<2x4x8x32xf32>
    %63 = vector.extract_strided_slice %62 {offsets = [0, 0, 0, 0], sizes = [2, 1, 8, 32], strides = [1, 1, 1, 1]} : vector<2x4x8x32xf32> to vector<2x1x8x32xf32>
    %64 = vector.shape_cast %63 : vector<2x1x8x32xf32> to vector<2x8x32xf32>
    %65 = vector.extract_strided_slice %62 {offsets = [0, 1, 0, 0], sizes = [2, 1, 8, 32], strides = [1, 1, 1, 1]} : vector<2x4x8x32xf32> to vector<2x1x8x32xf32>
    %66 = vector.shape_cast %65 : vector<2x1x8x32xf32> to vector<2x8x32xf32>
    %67 = vector.extract_strided_slice %62 {offsets = [0, 2, 0, 0], sizes = [2, 1, 8, 32], strides = [1, 1, 1, 1]} : vector<2x4x8x32xf32> to vector<2x1x8x32xf32>
    %68 = vector.shape_cast %67 : vector<2x1x8x32xf32> to vector<2x8x32xf32>
    %69 = vector.extract_strided_slice %62 {offsets = [0, 3, 0, 0], sizes = [2, 1, 8, 32], strides = [1, 1, 1, 1]} : vector<2x4x8x32xf32> to vector<2x1x8x32xf32>
    %70 = vector.shape_cast %69 : vector<2x1x8x32xf32> to vector<2x8x32xf32>
    %71 = tpu.concatenate %64, %66, %68, %70 in 2 : vector<2x8x32xf32>, vector<2x8x32xf32>, vector<2x8x32xf32>, vector<2x8x32xf32> -> vector<2x8x128xf32>
    %72 = vector.shape_cast %71 : vector<2x8x128xf32> to vector<16x128xf32>
    %73 = arith.truncf %72 : vector<16x128xf32> to vector<16x128xbf16>
    %c0_18 = arith.constant 0 : index
    %c0_19 = arith.constant 0 : index
    %74 = vector.load %arg3[%c0_18, %c0_19] : memref<128x32xbf16, #tpu.memory_space<vmem>>, vector<128x32xbf16>
    %cst_20 = arith.constant dense<0.000000e+00> : vector<16x32xf32>
    %75 = tpu.matmul %73, %74, %cst_20 {dimension_numbers = #tpu.dot_dimension_numbers<[1], [0], [0], [1], [0, 0, 1, 1], [], []>} : vector<16x128xbf16>, vector<128x32xbf16>, vector<16x32xf32> -> vector<16x32xf32>
    %76 = vector.broadcast %4 : vector<1x32xf32> to vector<16x32xf32>
    %77 = arith.addf %75, %76 : vector<16x32xf32>
    %c0_21 = arith.constant 0 : index
    %c0_22 = arith.constant 0 : index
    %78 = vector.load %arg6[%c0_21, %c0_22] : memref<16x32xf32, #tpu.memory_space<vmem>>, vector<16x32xf32>
    tpu.vector_store %arg6[%c0_21, %c0_22], %77 {strides = array<i32>} : memref<16x32xf32, #tpu.memory_space<vmem>>, vector<16x32xf32>,
    return
  }
}

</mosaic_0001>

<llo_original>
// kernel: tpu_custom_call.1
$region0: #{tpu_custom_call.1}
  #allocation0 [shape = 'u32[]', space=smem, size = 0x4, offset = 0x4, fixed_abs, tag = 'smem constant byte address 0x4 - core index']
  #allocation1 [shape = 'u32[144,128]{1,0:T(1,128)}', space=vmem, size = 0x12000, scoped, tag = 'internal scratch']
  %s0 = inlined_call_operand.vmem [shape: f32[16,32], index: 0, kind: input, shape index: {}]
  %s1 = inlined_call_operand.vmem [shape: bf16[32,96], index: 1, kind: input, shape index: {}]
  %s2 = inlined_call_operand.vmem [shape: f32[1,96], index: 2, kind: input, shape index: {}]
  %s3 = inlined_call_operand.vmem [shape: bf16[128,32], index: 3, kind: input, shape index: {}]
  %s4 = inlined_call_operand.vmem [shape: f32[4,32], index: 4, kind: input, shape index: {}]
  %s5 = inlined_call_operand.vmem [shape: f32[3,32], index: 5, kind: input, shape index: {}]
  %s6 = inlined_call_operand.hbm [shape: f32[16,32], index: 6, kind: output, shape index: {}]
  %s7 = sld [smem:[#allocation0]]
  $region34: #{tpu_custom_call.1} parent=0
    _
  %s9 = ssub.s32 1, %s7
  %s10 = scalar_select 0, %s9, %s7
  $region1: #{tpu_custom_call.1} parent=0
    #allocation2 [shape = 'u8[8192]{0}', space=vmem, size = 0x2000, scoped, tag = 'output window, operand 0, single buffered']
    #allocation3 [shape = 's32[1]{0}', space=sflag, size = 0x4, scoped, tag = 'scoped memory for tpu_custom_call.1']
    %11 = vsyncpa [#allocation3], 0
    // Predicated region
    $region2: #{tpu_custom_call.1} parent=1 // pred_check
      _
    $region3: #{tpu_custom_call.1} parent=1 // pred_check_branch
      %13 = sbr.rel (0) target = $region5
    $region4: #{tpu_custom_call.1} parent=1 // pred_region
      _
    $region5: #{tpu_custom_call.1} parent=1 // pred_fallthru
      _
    // Predicated region
    $region6: #{tpu_custom_call.1} parent=1 // pred_check
      _
    $region7: #{tpu_custom_call.1} parent=1 // pred_check_branch
      %15 = sbr.rel (0) target = $region9
    $region8: #{tpu_custom_call.1} parent=1 // pred_region
      _
    $region9: #{tpu_custom_call.1} parent=1 // pred_fallthru
      _
    // Predicated region
    $region10: #{tpu_custom_call.1} parent=1 // pred_check
      _
    $region11: #{tpu_custom_call.1} parent=1 // pred_check_branch
      %17 = sbr.rel (0) target = $region13
    $region12: #{tpu_custom_call.1} parent=1 // pred_region
      _
    $region13: #{tpu_custom_call.1} parent=1 // pred_fallthru
      _
    // Predicated region
    $region14: #{tpu_custom_call.1} parent=1 // pred_check
      _
    $region15: #{tpu_custom_call.1} parent=1 // pred_check_branch
      %19 = sbr.rel (0) target = $region17
    $region16: #{tpu_custom_call.1} parent=1 // pred_region
      _
    $region17: #{tpu_custom_call.1} parent=1 // pred_fallthru
      _
    // Predicated region
    $region18: #{tpu_custom_call.1} parent=1 // pred_check
      _
    $region19: #{tpu_custom_call.1} parent=1 // pred_check_branch
      %21 = sbr.rel (0) target = $region21
    $region20: #{tpu_custom_call.1} parent=1 // pred_region
      _
    $region21: #{tpu_custom_call.1} parent=1 // pred_fallthru
      _
    // Predicated region
    $region22: #{tpu_custom_call.1} parent=1 // pred_check
      _
    $region23: #{tpu_custom_call.1} parent=1 // pred_check_branch
      %23 = sbr.rel (0) target = $region25
    $region24: #{tpu_custom_call.1} parent=1 // pred_region
      _
    $region25: #{tpu_custom_call.1} parent=1 // pred_fallthru
      _
    %v25 = vld [vmem:[%s0] sm:$0xff]
    %v26 = vld [vmem:[%s0 + $0x8] sm:$0xff]
    %v27 = vld [vmem:[%s5] sm:$0x7]
    %vm28 = vcmask 261120
    %v29 = vsel %vm28, %v25, 0.0
    %30 = vadd.xlane.f32.xlu0 %v29
    %v31 = vpop.xlane.xlu0 %30
    %v32 = vsel %vm28, %v26, 0.0
    %33 = vadd.xlane.f32.xlu0 %v32
    %v34 = vpop.xlane.xlu0 %33
    %v35 = vrcp.pop 32.0
    %v36 = vmul.f32 %v31, %v35
    %v37 = vmul.f32 %v34, %v35
    %v38 = vsub.f32 %v25, %v36
    %v39 = vsub.f32 %v26, %v37
    %v40 = vmul.f32 %v38, %v38
    %v41 = vmul.f32 %v39, %v39
    %v42 = vsel %vm28, %v40, 0.0
    %43 = vadd.xlane.f32.xlu0 %v42
    %v44 = vpop.xlane.xlu0 %43
    %v45 = vsel %vm28, %v41, 0.0
    %46 = vadd.xlane.f32.xlu0 %v45
    %v47 = vpop.xlane.xlu0 %46
    %v48 = vmul.f32 %v44, %v35
    %v49 = vmul.f32 %v47, %v35
    %v50 = vadd.f32 %v48, 1e-06
    %v51 = vadd.f32 %v49, 1e-06
    %v52 = vrsqrt.pop %v50
    %v53 = vrsqrt.pop %v51
    %v54 = vmul.f32 %v38, %v52
    %v55 = vmul.f32 %v39, %v53
    %v56 = vlaneseq
    %v57 = vshrl.u32 %v56, 7
    %v58 = vsub.s32 0, %v57
    %v59 = vrot.slane %v27, %v58
    %v60 = vmul.f32 %v54, %v59
    %v61 = vmul.f32 %v55, %v59
    %v62 = vlaneseq
    %v63 = vshrl.u32 %v62, 7
    %v64 = vsub.s32 1, %v63
    %v65 = vrot.slane %v27, %v64
    %v66 = vadd.f32 %v60, %v65
    %v67 = vadd.f32 %v61, %v65
    %v68 = vpack.c.bf16 %v67, %v66
    %v69 = vld [vmem:[%s1] sm:$0xf]
    %v70 = vld [vmem:[%s1 + $0x4] sm:$0xf]
    %v71 = vld [vmem:[%s1 + $0x8] sm:$0xf]
    %v72 = vld [vmem:[%s1 + $0xc] sm:$0xf]
    %v73 = vld [vmem:[%s2] sm:$0x1]
    %v75 = vlaneseq
    %v76 = vshrl.u32 %v75, 7
    %v77 = vsub.s32 0, %v76
    %v78 = vrot.slane %v73, %v77
    %v84 = vunpack.c.l.b16 %v69
    %v85 = vunpack.c.l.b16 %v70
    %v86 = vunpack.c.l.b16 %v71
    %v87 = vunpack.c.l.b16 %v72
    %v88 = vpack.c.b16 %v85, %v84
    %v89 = vpack.c.b16 %v87, %v86
    %v93 = vsel %vm28, %v68, 0
    %95 = vmatprep.subr.bf16.mxu0 0
    %96 = vmatpush1.bf16.msra.mxu0 0
    %97 = vmatprep.subr.bf16.mxu0 0
    %98 = vmatpush1.bf16.msra.mxu0 0
    %99 = vmatprep.subr.bf16.mxu0 0
    %100 = vmatpush1.bf16.msra.mxu0 0
    %101 = vmatprep.subr.bf16.mxu0 0
    %102 = vmatpush1.bf16.msra.mxu0 0
    %103 = vmatprep.subr.bf16.mxu0 0
    %104 = vmatpush1.bf16.msra.mxu0 0
    %105 = vmatprep.subr.bf16.mxu0 0
    %106 = vmatpush1.bf16.msra.mxu0 0
    %107 = vmatprep.subr.bf16.mxu0 0
    %108 = vmatpush1.bf16.msra.mxu0 %v89
    %109 = vmatprep.subr.bf16.mxu0 0
    %110 = vmatpush1.bf16.msra.mxu0 %v88
    %111 = vmatprep.subr.bf16.mxu0 0
    %112 = vmatpush2.bf16.msra.mxu0 0
    %113 = vmatprep.subr.bf16.mxu0 0
    %114 = vmatpush2.bf16.msra.mxu0 0
    %115 = vmatprep.subr.bf16.mxu0 0
    %116 = vmatpush2.bf16.msra.mxu0 0
    %117 = vmatprep.subr.bf16.mxu0 0
    %118 = vmatpush2.bf16.msra.mxu0 0
    %119 = vmatprep.subr.bf16.mxu0 0
    %120 = vmatpush2.bf16.msra.mxu0 0
    %121 = vmatprep.subr.bf16.mxu0 0
    %122 = vmatpush2.bf16.msra.mxu0 0
    %123 = vmatprep.subr.bf16.mxu0 0
    %124 = vmatpush2.bf16.msra.mxu0 0
    %125 = vmatprep.subr.bf16.mxu0 0
    %126 = vmatpush2.bf16.msra.mxu0 0
    %127 = vmatprep.mubr.bf16.mxu0 0
    %128 = vmatmul.mubr.bf16.gmra.mxu0 %v93
    %v129 = vpop.f32.mrf.mxu0
    %v130 = vadd.f32 %v78, %v129
    %v131 = vpop.f32.mrf.mxu0
    %v132 = vpop.f32.mrf.mxu0
    %v133 = vadd.f32 %v78, %v132
    %v134 = vpop.f32.mrf.mxu0
    %135 = vdwg.mxu0
    %v136 = vpack.c.bf16 %v130, %v130
    %v137 = vpack.c.bf16 %v133, %v133
    %v138 = vld [vmem:[%s4] sm:$0xf]
    %v141 = vunpack.c.l.s4 1966171168
    %v142 = vunpack.c.0.s8 %v141
    %v143 = vlaneseq
    %v144 = vshrl.u32 %v143, 7
    %v145 = vsub.s32 %v142, %v144
    %v146 = vrot.slane %v138, %v145
    %v147 = vcombine.high %v146, %v146
    %v149 = vunpack.c.l.s4 1966171168
    %v150 = vunpack.c.0.s8 %v149
    %v151 = vlaneseq
    %v152 = vshrl.u32 %v151, 7
    %v153 = vsub.s32 %v150, %v152
    %v154 = vrot.slane %v146, %v153
    %v156 = vunpack.c.l.s4 1966171168
    %v157 = vunpack.c.0.s8 %v156
    %v158 = vlaneseq
    %v159 = vshrl.u32 %v158, 7
    %v160 = vsub.s32 %v157, %v159
    %v161 = vrot.slane %v147, %v160
    %v162 = vcombine.high %v154, %v154
    %v163 = vcombine.high %v161, %v161
    %v164 = vlaneseq
    %v165 = vshrl.u32 %v164, 7
    %v166 = vsub.s32 0, %v165
    %v167 = vrot.slane %v154, %v166
    %v168 = vlaneseq
    %v169 = vshrl.u32 %v168, 7
    %v170 = vsub.s32 0, %v169
    %v171 = vrot.slane %v161, %v170
    %v172 = vlaneseq
    %v173 = vshrl.u32 %v172, 7
    %v174 = vsub.s32 0, %v173
    %v175 = vrot.slane %v162, %v174
    %v176 = vlaneseq
    %v177 = vshrl.u32 %v176, 7
    %v178 = vsub.s32 0, %v177
    %v179 = vrot.slane %v163, %v178
    %v184 = vmul.f32 %v130, %v167
    %v185 = vmul.f32 %v130, %v171
    %v186 = vmul.f32 %v130, %v175
    %v187 = vmul.f32 %v130, %v179
    %v188 = vmul.f32 %v133, %v167
    %v189 = vmul.f32 %v133, %v171
    %v190 = vmul.f32 %v133, %v175
    %v191 = vmul.f32 %v133, %v179
    %v192 = vpack.c.bf16 %v185, %v184
    %v193 = vpack.c.bf16 %v187, %v186
    %v194 = vpack.c.bf16 %v189, %v188
    %v195 = vpack.c.bf16 %v191, %v190
    %197 = vrot.lane.b32.xlu0 %v136, 96
    %v198 = vpop.permute.xlu0 %197
    %v200 = vsel %vm28, %v192, 0
    %v203 = vsel %vm28, %v193, 0
    %v206 = vsel %vm28, %v198, 0
    %208 = vmatprep.subr.bf16.mxu0 0
    %209 = vmatpush1.bf16.xpose.msra.mxu0 0
    %210 = vmatprep.subr.bf16.mxu0 0
    %211 = vmatpush1.bf16.xpose.msra.mxu0 0
    %212 = vmatprep.subr.bf16.mxu0 0
    %213 = vmatpush1.bf16.xpose.msra.mxu0 0
    %214 = vmatprep.subr.bf16.mxu0 0
    %215 = vmatpush1.bf16.xpose.msra.mxu0 0
    %216 = vmatprep.subr.bf16.mxu0 0
    %217 = vmatpush1.bf16.xpose.msra.mxu0 0
    %218 = vmatprep.subr.bf16.mxu0 0
    %219 = vmatpush1.bf16.xpose.msra.mxu0 0
    %220 = vmatprep.subr.bf16.mxu0 0
    %221 = vmatpush1.bf16.xpose.msra.mxu0 0
    %222 = vmatprep.subr.bf16.mxu0 0
    %223 = vmatpush1.bf16.xpose.msra.mxu0 %v206
    %224 = vmatprep.subr.bf16.mxu0 0
    %225 = vmatpush2.bf16.xpose.msra.mxu0 0
    %226 = vmatprep.subr.bf16.mxu0 0
    %227 = vmatpush2.bf16.xpose.msra.mxu0 0
    %228 = vmatprep.subr.bf16.mxu0 0
    %229 = vmatpush2.bf16.xpose.msra.mxu0 0
    %230 = vmatprep.subr.bf16.mxu0 0
    %231 = vmatpush2.bf16.xpose.msra.mxu0 0
    %232 = vmatprep.subr.bf16.mxu0 0
    %233 = vmatpush2.bf16.xpose.msra.mxu0 0
    %234 = vmatprep.subr.bf16.mxu0 0
    %235 = vmatpush2.bf16.xpose.msra.mxu0 0
    %236 = vmatprep.subr.bf16.mxu0 0
    %237 = vmatpush2.bf16.xpose.msra.mxu0 0
    %238 = vmatprep.subr.bf16.mxu0 0
    %239 = vmatpush2.bf16.xpose.msra.mxu0 0
    %240 = vmatprep.mubr.bf16.mxu0 0
    %241 = vmatmul.mubr.bf16.gmra.mxu0 %v200
    %v242 = vpop.f32.mrf.mxu0
    %v243 = vadd.f32 0.0, %v242
    %v244 = vpop.f32.mrf.mxu0
    %v245 = vpop.f32.mrf.mxu0
    %v246 = vadd.f32 0.0, %v245
    %v247 = vpop.f32.mrf.mxu0
    %248 = vmatprep.mubr.bf16.mxu0 0
    %249 = vmatmul.mubr.bf16.gmra.mxu0 %v203
    %v250 = vpop.f32.mrf.mxu0
    %v251 = vadd.f32 0.0, %v250
    %v252 = vpop.f32.mrf.mxu0
    %v253 = vpop.f32.mrf.mxu0
    %v254 = vadd.f32 0.0, %v253
    %v255 = vpop.f32.mrf.mxu0
    %256 = vdwg.mxu0
    %258 = vrot.lane.b32.xlu0 %v137, 96
    %v259 = vpop.permute.xlu0 %258
    %v261 = vsel %vm28, %v194, 0
    %v264 = vsel %vm28, %v195, 0
    %v267 = vsel %vm28, %v259, 0
    %269 = vmatprep.subr.bf16.mxu0 0
    %270 = vmatpush1.bf16.xpose.msra.mxu0 0
    %271 = vmatprep.subr.bf16.mxu0 0
    %272 = vmatpush1.bf16.xpose.msra.mxu0 0
    %273 = vmatprep.subr.bf16.mxu0 0
    %274 = vmatpush1.bf16.xpose.msra.mxu0 0
    %275 = vmatprep.subr.bf16.mxu0 0
    %276 = vmatpush1.bf16.xpose.msra.mxu0 0
    %277 = vmatprep.subr.bf16.mxu0 0
    %278 = vmatpush1.bf16.xpose.msra.mxu0 0
    %279 = vmatprep.subr.bf16.mxu0 0
    %280 = vmatpush1.bf16.xpose.msra.mxu0 0
    %281 = vmatprep.subr.bf16.mxu0 0
    %282 = vmatpush1.bf16.xpose.msra.mxu0 0
    %283 = vmatprep.subr.bf16.mxu0 0
    %284 = vmatpush1.bf16.xpose.msra.mxu0 %v267
    %285 = vmatprep.subr.bf16.mxu0 0
    %286 = vmatpush2.bf16.xpose.msra.mxu0 0
    %287 = vmatprep.subr.bf16.mxu0 0
    %288 = vmatpush2.bf16.xpose.msra.mxu0 0
    %289 = vmatprep.subr.bf16.mxu0 0
    %290 = vmatpush2.bf16.xpose.msra.mxu0 0
    %291 = vmatprep.subr.bf16.mxu0 0
    %292 = vmatpush2.bf16.xpose.msra.mxu0 0
    %293 = vmatprep.subr.bf16.mxu0 0
    %294 = vmatpush2.bf16.xpose.msra.mxu0 0
    %295 = vmatprep.subr.bf16.mxu0 0
    %296 = vmatpush2.bf16.xpose.msra.mxu0 0
    %297 = vmatprep.subr.bf16.mxu0 0
    %298 = vmatpush2.bf16.xpose.msra.mxu0 0
    %299 = vmatprep.subr.bf16.mxu0 0
    %300 = vmatpush2.bf16.xpose.msra.mxu0 0
    %301 = vmatprep.mubr.bf16.mxu0 0
    %302 = vmatmul.mubr.bf16.gmra.mxu0 %v261
    %v303 = vpop.f32.mrf.mxu0
    %v304 = vadd.f32 0.0, %v303
    %v305 = vpop.f32.mrf.mxu0
    %v306 = vpop.f32.mrf.mxu0
    %v307 = vadd.f32 0.0, %v306
    %v308 = vpop.f32.mrf.mxu0
    %309 = vmatprep.mubr.bf16.mxu0 0
    %310 = vmatmul.mubr.bf16.gmra.mxu0 %v264
    %v311 = vpop.f32.mrf.mxu0
    %v312 = vadd.f32 0.0, %v311
    %v313 = vpop.f32.mrf.mxu0
    %v314 = vpop.f32.mrf.mxu0
    %v315 = vadd.f32 0.0, %v314
    %v316 = vpop.f32.mrf.mxu0
    %317 = vdwg.mxu0
    %vm318 = vcmask 64512
    %v319 = vsel %vm318, %v243, -inf
    %320 = vmax.xlane.f32.xlu0 %v319
    %v321 = vpop.xlane.xlu0 %320
    %v322 = vsel %vm318, %v246, -inf
    %323 = vmax.xlane.f32.xlu0 %v322
    %v324 = vpop.xlane.xlu0 %323
    %v325 = vsel %vm318, %v251, -inf
    %326 = vmax.xlane.f32.xlu0 %v325
    %v327 = vpop.xlane.xlu0 %326
    %v328 = vsel %vm318, %v254, -inf
    %329 = vmax.xlane.f32.xlu0 %v328
    %v330 = vpop.xlane.xlu0 %329
    %v331 = vsel %vm318, %v304, -inf
    %332 = vmax.xlane.f32.xlu0 %v331
    %v333 = vpop.xlane.xlu0 %332
    %v334 = vsel %vm318, %v307, -inf
    %335 = vmax.xlane.f32.xlu0 %v334
    %v336 = vpop.xlane.xlu0 %335
    %v337 = vsel %vm318, %v312, -inf
    %338 = vmax.xlane.f32.xlu0 %v337
    %v339 = vpop.xlane.xlu0 %338
    %v340 = vsel %vm318, %v315, -inf
    %341 = vmax.xlane.f32.xlu0 %v340
    %v342 = vpop.xlane.xlu0 %341
    %v343 = vsub.f32 %v243, %v321
    %v344 = vsub.f32 %v246, %v324
    %v345 = vsub.f32 %v251, %v327
    %v346 = vsub.f32 %v254, %v330
    %v347 = vsub.f32 %v304, %v333
    %v348 = vsub.f32 %v307, %v336
    %v349 = vsub.f32 %v312, %v339
    %v350 = vsub.f32 %v315, %v342
    %v351 = vmul.f32 %v343, 1.442695
    %v352 = vpow.pop %v351
    %v353 = vmul.f32 %v344, 1.442695
    %v354 = vpow.pop %v353
    %v355 = vmul.f32 %v345, 1.442695
    %v356 = vpow.pop %v355
    %v357 = vmul.f32 %v346, 1.442695
    %v358 = vpow.pop %v357
    %v359 = vmul.f32 %v347, 1.442695
    %v360 = vpow.pop %v359
    %v361 = vmul.f32 %v348, 1.442695
    %v362 = vpow.pop %v361
    %v363 = vmul.f32 %v349, 1.442695
    %v364 = vpow.pop %v363
    %v365 = vmul.f32 %v350, 1.442695
    %v366 = vpow.pop %v365
    %v367 = vsel %vm318, %v352, 0.0
    %368 = vadd.xlane.f32.xlu0 %v367
    %v369 = vpop.xlane.xlu0 %368
    %v370 = vsel %vm318, %v354, 0.0
    %371 = vadd.xlane.f32.xlu0 %v370
    %v372 = vpop.xlane.xlu0 %371
    %v373 = vsel %vm318, %v356, 0.0
    %374 = vadd.xlane.f32.xlu0 %v373
    %v375 = vpop.xlane.xlu0 %374
    %v376 = vsel %vm318, %v358, 0.0
    %377 = vadd.xlane.f32.xlu0 %v376
    %v378 = vpop.xlane.xlu0 %377
    %v379 = vsel %vm318, %v360, 0.0
    %380 = vadd.xlane.f32.xlu0 %v379
    %v381 = vpop.xlane.xlu0 %380
    %v382 = vsel %vm318, %v362, 0.0
    %383 = vadd.xlane.f32.xlu0 %v382
    %v384 = vpop.xlane.xlu0 %383
    %v385 = vsel %vm318, %v364, 0.0
    %386 = vadd.xlane.f32.xlu0 %v385
    %v387 = vpop.xlane.xlu0 %386
    %v388 = vsel %vm318, %v366, 0.0
    %389 = vadd.xlane.f32.xlu0 %v388
    %v390 = vpop.xlane.xlu0 %389
    %v391 = vrcp.pop %v369
    %v392 = vrcp.pop %v372
    %v393 = vrcp.pop %v375
    %v394 = vrcp.pop %v378
    %v395 = vrcp.pop %v381
    %v396 = vrcp.pop %v384
    %v397 = vrcp.pop %v387
    %v398 = vrcp.pop %v390
    %v399 = vmul.f32 %v352, %v391
    %v400 = vmul.f32 %v354, %v392
    %v401 = vmul.f32 %v356, %v393
    %v402 = vmul.f32 %v358, %v394
    %v403 = vmul.f32 %v360, %v395
    %v404 = vmul.f32 %v362, %v396
    %v405 = vmul.f32 %v364, %v397
    %v406 = vmul.f32 %v366, %v398
    %v407 = vpack.c.bf16 %v400, %v399
    %v408 = vpack.c.bf16 %v402, %v401
    %v409 = vpack.c.bf16 %v404, %v403
    %v410 = vpack.c.bf16 %v406, %v405
    %411 = vrot.lane.b32.xlu0 %v136, 64
    %v412 = vpop.permute.xlu0 %411
    %v414 = vsel %vm318, %v407, 0
    %v417 = vsel %vm318, %v408, 0
    %vm419 = vcmask 1043456
    %v421 = vsel %vm419, %v412, 0
    %423 = vmatprep.subr.bf16.mxu0 0
    %424 = vmatpush1.bf16.msra.mxu0 0
    %425 = vmatprep.subr.bf16.mxu0 0
    %426 = vmatpush1.bf16.msra.mxu0 0
    %427 = vmatprep.subr.bf16.mxu0 0
    %428 = vmatpush1.bf16.msra.mxu0 0
    %429 = vmatprep.subr.bf16.mxu0 0
    %430 = vmatpush1.bf16.msra.mxu0 0
    %431 = vmatprep.subr.bf16.mxu0 0
    %432 = vmatpush1.bf16.msra.mxu0 0
    %433 = vmatprep.subr.bf16.mxu0 0
    %434 = vmatpush1.bf16.msra.mxu0 0
    %435 = vmatprep.subr.bf16.mxu0 0
    %436 = vmatpush1.bf16.msra.mxu0 0
    %437 = vmatprep.subr.bf16.mxu0 0
    %438 = vmatpush1.bf16.msra.mxu0 %v421
    %439 = vmatprep.subr.bf16.mxu0 0
    %440 = vmatpush2.bf16.msra.mxu0 0
    %441 = vmatprep.subr.bf16.mxu0 0
    %442 = vmatpush2.bf16.msra.mxu0 0
    %443 = vmatprep.subr.bf16.mxu0 0
    %444 = vmatpush2.bf16.msra.mxu0 0
    %445 = vmatprep.subr.bf16.mxu0 0
    %446 = vmatpush2.bf16.msra.mxu0 0
    %447 = vmatprep.subr.bf16.mxu0 0
    %448 = vmatpush2.bf16.msra.mxu0 0
    %449 = vmatprep.subr.bf16.mxu0 0
    %450 = vmatpush2.bf16.msra.mxu0 0
    %451 = vmatprep.subr.bf16.mxu0 0
    %452 = vmatpush2.bf16.msra.mxu0 0
    %453 = vmatprep.subr.bf16.mxu0 0
    %454 = vmatpush2.bf16.msra.mxu0 0
    %455 = vmatprep.mubr.bf16.mxu0 0
    %456 = vmatmul.mubr.bf16.gmra.mxu0 %v414
    %v457 = vpop.f32.mrf.mxu0
    %v458 = vadd.f32 0.0, %v457
    %v459 = vpop.f32.mrf.mxu0
    %v460 = vpop.f32.mrf.mxu0
    %v461 = vadd.f32 0.0, %v460
    %v462 = vpop.f32.mrf.mxu0
    %463 = vmatprep.mubr.bf16.mxu0 0
    %464 = vmatmul.mubr.bf16.gmra.mxu0 %v417
    %v465 = vpop.f32.mrf.mxu0
    %v466 = vadd.f32 0.0, %v465
    %v467 = vpop.f32.mrf.mxu0
    %v468 = vpop.f32.mrf.mxu0
    %v469 = vadd.f32 0.0, %v468
    %v470 = vpop.f32.mrf.mxu0
    %471 = vdwg.mxu0
    %472 = vrot.lane.b32.xlu0 %v137, 64
    %v473 = vpop.permute.xlu0 %472
    %v475 = vsel %vm318, %v409, 0
    %v478 = vsel %vm318, %v410, 0
    %v481 = vsel %vm419, %v473, 0
    %483 = vmatprep.subr.bf16.mxu0 0
    %484 = vmatpush1.bf16.msra.mxu0 0
    %485 = vmatprep.subr.bf16.mxu0 0
    %486 = vmatpush1.bf16.msra.mxu0 0
    %487 = vmatprep.subr.bf16.mxu0 0
    %488 = vmatpush1.bf16.msra.mxu0 0
    %489 = vmatprep.subr.bf16.mxu0 0
    %490 = vmatpush1.bf16.msra.mxu0 0
    %491 = vmatprep.subr.bf16.mxu0 0
    %492 = vmatpush1.bf16.msra.mxu0 0
    %493 = vmatprep.subr.bf16.mxu0 0
    %494 = vmatpush1.bf16.msra.mxu0 0
    %495 = vmatprep.subr.bf16.mxu0 0
    %496 = vmatpush1.bf16.msra.mxu0 0
    %497 = vmatprep.subr.bf16.mxu0 0
    %498 = vmatpush1.bf16.msra.mxu0 %v481
    %499 = vmatprep.subr.bf16.mxu0 0
    %500 = vmatpush2.bf16.msra.mxu0 0
    %501 = vmatprep.subr.bf16.mxu0 0
    %502 = vmatpush2.bf16.msra.mxu0 0
    %503 = vmatprep.subr.bf16.mxu0 0
    %504 = vmatpush2.bf16.msra.mxu0 0
    %505 = vmatprep.subr.bf16.mxu0 0
    %506 = vmatpush2.bf16.msra.mxu0 0
    %507 = vmatprep.subr.bf16.mxu0 0
    %508 = vmatpush2.bf16.msra.mxu0 0
    %509 = vmatprep.subr.bf16.mxu0 0
    %510 = vmatpush2.bf16.msra.mxu0 0
    %511 = vmatprep.subr.bf16.mxu0 0
    %512 = vmatpush2.bf16.msra.mxu0 0
    %513 = vmatprep.subr.bf16.mxu0 0
    %514 = vmatpush2.bf16.msra.mxu0 0
    %515 = vmatprep.mubr.bf16.mxu0 0
    %516 = vmatmul.mubr.bf16.gmra.mxu0 %v475
    %v517 = vpop.f32.mrf.mxu0
    %v518 = vadd.f32 0.0, %v517
    %v519 = vpop.f32.mrf.mxu0
    %v520 = vpop.f32.mrf.mxu0
    %v521 = vadd.f32 0.0, %v520
    %v522 = vpop.f32.mrf.mxu0
    %523 = vmatprep.mubr.bf16.mxu0 0
    %524 = vmatmul.mubr.bf16.gmra.mxu0 %v478
    %v525 = vpop.f32.mrf.mxu0
    %v526 = vadd.f32 0.0, %v525
    %v527 = vpop.f32.mrf.mxu0
    %v528 = vpop.f32.mrf.mxu0
    %v529 = vadd.f32 0.0, %v528
    %v530 = vpop.f32.mrf.mxu0
    %531 = vdwg.mxu0
    %534 = vrot.lane.b32.xlu0 %v461, 32
    %v535 = vpop.permute.xlu0 %534
    %536 = vrot.lane.b32.xlu0 %v521, 32
    %v537 = vpop.permute.xlu0 %536
    %542 = vrot.lane.b32.xlu0 %v466, 64
    %v543 = vpop.permute.xlu0 %542
    %544 = vrot.lane.b32.xlu0 %v526, 64
    %v545 = vpop.permute.xlu0 %544
    %550 = vrot.lane.b32.xlu0 %v469, 96
    %v551 = vpop.permute.xlu0 %550
    %552 = vrot.lane.b32.xlu0 %v529, 96
    %v553 = vpop.permute.xlu0 %552
    %v556 = vsel %vm28, %v458, %v535
    %v557 = vsel %vm28, %v518, %v537
    %vm558 = vcmask 523264
    %v559 = vsel %vm558, %v556, %v543
    %v560 = vsel %vm558, %v557, %v545
    %vm561 = vcmask 785408
    %v562 = vsel %vm561, %v559, %v551
    %v563 = vsel %vm561, %v560, %v553
    %v564 = vpack.c.bf16 %v563, %v562
    %v565 = vld [vmem:[%s3] sm:$0xf]
    %v566 = vld [vmem:[%s3 + $0x4] sm:$0xf]
    %v567 = vld [vmem:[%s3 + $0x8] sm:$0xf]
    %v568 = vld [vmem:[%s3 + $0xc] sm:$0xf]
    %v569 = vld [vmem:[%s3 + $0x10] sm:$0xf]
    %v570 = vld [vmem:[%s3 + $0x14] sm:$0xf]
    %v571 = vld [vmem:[%s3 + $0x18] sm:$0xf]
    %v572 = vld [vmem:[%s3 + $0x1c] sm:$0xf]
    %v573 = vld [vmem:[%s3 + $0x20] sm:$0xf]
    %v574 = vld [vmem:[%s3 + $0x24] sm:$0xf]
    %v575 = vld [vmem:[%s3 + $0x28] sm:$0xf]
    %v576 = vld [vmem:[%s3 + $0x2c] sm:$0xf]
    %v577 = vld [vmem:[%s3 + $0x30] sm:$0xf]
    %v578 = vld [vmem:[%s3 + $0x34] sm:$0xf]
    %v579 = vld [vmem:[%s3 + $0x38] sm:$0xf]
    %v580 = vld [vmem:[%s3 + $0x3c] sm:$0xf]
    %v581 = vlaneseq
    %v582 = vshrl.u32 %v581, 7
    %v583 = vsub.s32 2, %v582
    %v584 = vrot.slane %v27, %v583
    %v601 = vunpack.c.l.b16 %v565
    %v602 = vunpack.c.l.b16 %v566
    %v603 = vunpack.c.l.b16 %v567
    %v604 = vunpack.c.l.b16 %v568
    %v605 = vunpack.c.l.b16 %v569
    %v606 = vunpack.c.l.b16 %v570
    %v607 = vunpack.c.l.b16 %v571
    %v608 = vunpack.c.l.b16 %v572
    %v609 = vunpack.c.l.b16 %v573
    %v610 = vunpack.c.l.b16 %v574
    %v611 = vunpack.c.l.b16 %v575
    %v612 = vunpack.c.l.b16 %v576
    %v613 = vunpack.c.l.b16 %v577
    %v614 = vunpack.c.l.b16 %v578
    %v615 = vunpack.c.l.b16 %v579
    %v616 = vunpack.c.l.b16 %v580
    %v617 = vpack.c.b16 %v602, %v601
    %v618 = vpack.c.b16 %v604, %v603
    %v619 = vpack.c.b16 %v606, %v605
    %v620 = vpack.c.b16 %v608, %v607
    %v621 = vpack.c.b16 %v610, %v609
    %v622 = vpack.c.b16 %v612, %v611
    %v623 = vpack.c.b16 %v614, %v613
    %v624 = vpack.c.b16 %v616, %v615
    %633 = vmatprep.subr.bf16.mxu0 0
    %634 = vmatpush1.bf16.msra.mxu0 %v624
    %635 = vmatprep.subr.bf16.mxu0 0
    %636 = vmatpush1.bf16.msra.mxu0 %v623
    %637 = vmatprep.subr.bf16.mxu0 0
    %638 = vmatpush1.bf16.msra.mxu0 %v622
    %639 = vmatprep.subr.bf16.mxu0 0
    %640 = vmatpush1.bf16.msra.mxu0 %v621
    %641 = vmatprep.subr.bf16.mxu0 0
    %642 = vmatpush1.bf16.msra.mxu0 %v620
    %643 = vmatprep.subr.bf16.mxu0 0
    %644 = vmatpush1.bf16.msra.mxu0 %v619
    %645 = vmatprep.subr.bf16.mxu0 0
    %646 = vmatpush1.bf16.msra.mxu0 %v618
    %647 = vmatprep.subr.bf16.mxu0 0
    %648 = vmatpush1.bf16.msra.mxu0 %v617
    %649 = vmatprep.subr.bf16.mxu0 0
    %650 = vmatpush2.bf16.msra.mxu0 0
    %651 = vmatprep.subr.bf16.mxu0 0
    %652 = vmatpush2.bf16.msra.mxu0 0
    %653 = vmatprep.subr.bf16.mxu0 0
    %654 = vmatpush2.bf16.msra.mxu0 0
    %655 = vmatprep.subr.bf16.mxu0 0
    %656 = vmatpush2.bf16.msra.mxu0 0
    %657 = vmatprep.subr.bf16.mxu0 0
    %658 = vmatpush2.bf16.msra.mxu0 0
    %659 = vmatprep.subr.bf16.mxu0 0
    %660 = vmatpush2.bf16.msra.mxu0 0
    %661 = vmatprep.subr.bf16.mxu0 0
    %662 = vmatpush2.bf16.msra.mxu0 0
    %663 = vmatprep.subr.bf16.mxu0 0
    %664 = vmatpush2.bf16.msra.mxu0 0
    %665 = vmatprep.mubr.bf16.mxu0 0
    %666 = vmatmul.mubr.bf16.gmra.mxu0 %v564
    %v667 = vpop.f32.mrf.mxu0
    %v668 = vadd.f32 %v584, %v667
    %v669 = vpop.f32.mrf.mxu0
    %v670 = vpop.f32.mrf.mxu0
    %v671 = vadd.f32 %v584, %v670
    %v672 = vpop.f32.mrf.mxu0
    %673 = vdwg.mxu0
    %674 = vst.msk [vmem:[#allocation2] sm:$0xff] %vm28, %v668
    %675 = vst.msk [vmem:[#allocation2 + $0x8] sm:$0xff] %vm28, %v671
    // Predicated region
    $region26: #{tpu_custom_call.1} parent=1 // pred_check
      _
    $region27: #{tpu_custom_call.1} parent=1 // pred_check_branch
      %677 = sbr.rel (0) target = $region29
    $region28: #{tpu_custom_call.1} parent=1 // pred_region
      %s679 = ssub.s32 256, 256
      %680 = vsyncadd [#allocation3], %s679
      %s681 = sshll.u32 [#allocation2], 4
      %s682 = int_to_ptr.vmem [resolvable:$true] %s681
      %687 = dma.vmem_to_hbm [thread:$0]  %s682, 256, %s6, [#allocation3], 128, 128, 8
    $region29: #{tpu_custom_call.1} parent=1 // pred_fallthru
      _
    // Predicated region
    $region30: #{tpu_custom_call.1} parent=1 // pred_check
      _
    $region31: #{tpu_custom_call.1} parent=1 // pred_check_branch
      %689 = sbr.rel (0) target = $region33
    $region32: #{tpu_custom_call.1} parent=1 // pred_region
      %690 = dma.done [#allocation3], 256
    $region33: #{tpu_custom_call.1} parent=1 // pred_fallthru
      _
    %691 = vsyncpa [#allocation3], 1

</llo_original>
